<compile_context>
chip_gen: v7x
topology: tpu7x:2x2x1
jax: 0.10.0
libtpu: 0.0.40
codegen_flags: <defaults>
</compile_context>

<pallas_src>
import jax
import jax.numpy as jnp
from jax import lax
from jax.experimental import pallas as pl
from jax.experimental.pallas import tpu as pltpu


_VMEM_LIMIT = 32 * 1024 * 1024   # scoped-VMEM budget safe on v5e/v6e/v7x
_CHUNK = 2048                    # flat pixels processed per inner step


def _round_up(a, b):
    return (a + b - 1) // b * b


def _cp():
    return pltpu.CompilerParams(dimension_semantics=("parallel",),
                                vmem_limit_bytes=_VMEM_LIMIT)


# ----------------------------------------------------------------------------
# Stem matmul: o = relu6(x @ w + bias)   (BN scale pre-folded into w)
# ----------------------------------------------------------------------------
def _pick_tile_m(M, cap=1024):
    """Largest row tile <= cap that divides M (multiple of 8), else None."""
    if M % 8 != 0:
        return None
    if M <= cap:
        return M
    t = cap - cap % 8
    while t >= 8:
        if M % t == 0:
            return t
        t -= 8
    return None


def fused_matmul_relu6(x, w, bias, out_dtype=jnp.bfloat16, tile_cap=1024):
    M, K = x.shape
    _, N = w.shape
    x = x.astype(jnp.bfloat16)
    w = w.astype(jnp.bfloat16)
    b2 = bias.reshape(1, N).astype(jnp.float32)

    TM = _pick_tile_m(M, tile_cap)
    Mp = M
    if TM is None:                           # rare fallback: pad rows
        TM = min(tile_cap, _round_up(M, 8))
        Mp = _round_up(M, TM)
        x = jnp.pad(x, ((0, Mp - M), (0, 0)))

    def kernel(x_ref, w_ref, b_ref, o_ref):
        y = jnp.dot(x_ref[...], w_ref[...], preferred_element_type=jnp.float32)
        o_ref[...] = jnp.clip(y + b_ref[...], 0.0, 6.0).astype(o_ref.dtype)

    out = pl.pallas_call(
        kernel,
        out_shape=jax.ShapeDtypeStruct((Mp, N), out_dtype),
        grid=(Mp // TM,),
        in_specs=[pl.BlockSpec((TM, K), lambda i: (i, 0)),
                  pl.BlockSpec((K, N), lambda i: (0, 0)),
                  pl.BlockSpec((1, N), lambda i: (0, 0))],
        out_specs=pl.BlockSpec((TM, N), lambda i: (i, 0)),
        compiler_params=_cp(),
    )(x, w, b2)
    return out[:M] if Mp != M else out


# ----------------------------------------------------------------------------
# Fused inverted-residual block, stride 1.
#   x: (N, H*W, Cin) bf16 flat NHWC -> (N, H*W, Cout) bf16
# expand -> VMEM scratch (flat, padded by W+1 zeros front/back) -> 3x3 dwconv
# (shifted contiguous slices + column-wrap masks) -> project (+residual).
# ----------------------------------------------------------------------------
def fused_ir_block_s1(x, H, W, blk):
    N, HW, Cin = x.shape
    assert HW == H * W
    mid = Cin * blk["expand"]
    Cout = blk["out"]
    has_expand = blk["expand"] != 1
    use_res = (Cin == Cout)
    CH = min(HW, _CHUNK)
    pad = W + 1
    L = HW + 2 * pad
    pow2 = (W & (W - 1)) == 0

    def kernel(*refs):
        if has_expand:
            (x_ref, pw_w_ref, pw_b_ref, dw_w_ref, dw_b_ref,
             pwl_w_ref, pwl_b_ref, o_ref, s_ref) = refs
        else:
            (x_ref, dw_w_ref, dw_b_ref, pwl_w_ref, pwl_b_ref,
             o_ref, s_ref) = refs

        # zero the flat halo padding (front + back rows of the image)
        zpad = jnp.zeros((pad, mid), jnp.float32)
        s_ref[0:pad, :] = zpad
        s_ref[pad + HW:, :] = zpad

        # 1x1 expand (+folded-BN bias + ReLU6) into VMEM scratch, chunked
        for p0 in range(0, HW, CH):
            c = min(CH, HW - p0)
            xv = x_ref[0, p0:p0 + c, :]
            if has_expand:
                e = jnp.dot(xv, pw_w_ref[...],
                            preferred_element_type=jnp.float32)
                e = jnp.clip(e + pw_b_ref[...], 0.0, 6.0)
            else:
                e = xv.astype(jnp.float32)
            s_ref[pad + p0:pad + p0 + c, :] = e

        w9 = dw_w_ref[...]                               # (9, mid) f32
        # 3x3 depthwise (+bias+ReLU6) and 1x1 project, chunked
        for p0 in range(0, HW, CH):
            c = min(CH, HW - p0)
            idx = lax.broadcasted_iota(jnp.int32, (c, 1), 0) + p0
            col = (idx & (W - 1)) if pow2 else (idx % W)
            not_left = (col != 0).astype(jnp.float32)
            not_right = (col != W - 1).astype(jnp.float32)
            acc = None
            for dx in range(3):
                g = None
                for dy in range(3):
                    start = dy * W + dx + p0
                    tap = s_ref[start:start + c, :]
                    term = tap * w9[dy * 3 + dx]
                    g = term if g is None else g + term
                if dx == 0:
                    g = g * not_left
                elif dx == 2:
                    g = g * not_right
                acc = g if acc is None else acc + g
            d = jnp.clip(acc + dw_b_ref[...], 0.0, 6.0)
            p = jnp.dot(d.astype(jnp.bfloat16), pwl_w_ref[...],
                        preferred_element_type=jnp.float32)
            p = p + pwl_b_ref[...]
            if use_res:
                p = p + x_ref[0, p0:p0 + c, :].astype(jnp.float32)
            o_ref[0, p0:p0 + c, :] = p.astype(o_ref.dtype)

    inputs = [x]
    in_specs = [pl.BlockSpec((1, HW, Cin), lambda n: (n, 0, 0))]
    if has_expand:
        inputs += [blk["pw_w"], blk["pw_b"].reshape(1, mid)]
        in_specs += [pl.BlockSpec((Cin, mid), lambda n: (0, 0)),
                     pl.BlockSpec((1, mid), lambda n: (0, 0))]
    inputs += [blk["dw_w"], blk["dw_b"].reshape(1, mid),
               blk["pwl_w"], blk["pwl_b"].reshape(1, Cout)]
    in_specs += [pl.BlockSpec((9, mid), lambda n: (0, 0)),
                 pl.BlockSpec((1, mid), lambda n: (0, 0)),
                 pl.BlockSpec((mid, Cout), lambda n: (0, 0)),
                 pl.BlockSpec((1, Cout), lambda n: (0, 0))]

    return pl.pallas_call(
        kernel,
        out_shape=jax.ShapeDtypeStruct((N, HW, Cout), jnp.bfloat16),
        grid=(N,),
        in_specs=in_specs,
        out_specs=pl.BlockSpec((1, HW, Cout), lambda n: (n, 0, 0)),
        scratch_shapes=[pltpu.VMEM((L, mid), jnp.float32)],
        compiler_params=_cp(),
    )(*inputs)


# ----------------------------------------------------------------------------
# Fused inverted-residual block, stride 2 (always has an expansion).
# Host splits the SMALL pre-expansion input into 4 spatial phases; each phase
# is expanded inside the kernel into a (front-zero-padded) flat VMEM scratch,
# and the stride-2 3x3 taps become contiguous shifted slices of those phases.
# ----------------------------------------------------------------------------
def fused_ir_block_s2(x, H, W, blk):
    N, HW, Cin = x.shape
    assert HW == H * W and H % 2 == 0 and W % 2 == 0
    Ho, Wo = H // 2, W // 2
    HWo = Ho * Wo
    mid = Cin * blk["expand"]
    Cout = blk["out"]
    CH = min(HWo, _CHUNK)
    pad = Wo + 1
    L = HWo + pad
    pow2 = (Wo & (Wo - 1)) == 0

    x4 = x.reshape(N, H, W, Cin)
    phases = [x4[:, a::2, b::2, :].reshape(N, HWo, Cin)
              for a in range(2) for b in range(2)]

    def kernel(q00, q01, q10, q11, pw_w_ref, pw_b_ref, dw_w_ref, dw_b_ref,
               pwl_w_ref, pwl_b_ref, o_ref, s_ref):
        qs = (q00, q01, q10, q11)
        s_ref[:, 0:pad, :] = jnp.zeros((4, pad, mid), jnp.float32)
        # expand each spatial phase into VMEM scratch (ReLU6 folded)
        for ph in range(4):
            for p0 in range(0, HWo, CH):
                c = min(CH, HWo - p0)
                e = jnp.dot(qs[ph][0, p0:p0 + c, :], pw_w_ref[...],
                            preferred_element_type=jnp.float32)
                e = jnp.clip(e + pw_b_ref[...], 0.0, 6.0)
                s_ref[ph, pad + p0:pad + p0 + c, :] = e

        w9 = dw_w_ref[...]
        for p0 in range(0, HWo, CH):
            c = min(CH, HWo - p0)
            idx = lax.broadcasted_iota(jnp.int32, (c, 1), 0) + p0
            col = (idx & (Wo - 1)) if pow2 else (idx % Wo)
            not_left = (col != 0).astype(jnp.float32)
            acc = None
            for dx in range(3):
                b = (dx + 1) % 2
                sx = 0 if dx == 0 else 1
                g = None
                for dy in range(3):
                    a = (dy + 1) % 2
                    sy = 0 if dy == 0 else 1
                    start = sy * Wo + sx + p0
                    tap = s_ref[2 * a + b, start:start + c, :]
                    term = tap * w9[dy * 3 + dx]
                    g = term if g is None else g + term
                if dx == 0:
                    g = g * not_left
                acc = g if acc is None else acc + g
            d = jnp.clip(acc + dw_b_ref[...], 0.0, 6.0)
            p = jnp.dot(d.astype(jnp.bfloat16), pwl_w_ref[...],
                        preferred_element_type=jnp.float32) + pwl_b_ref[...]
            o_ref[0, p0:p0 + c, :] = p.astype(o_ref.dtype)

    ph_spec = pl.BlockSpec((1, HWo, Cin), lambda n: (n, 0, 0))
    return pl.pallas_call(
        kernel,
        out_shape=jax.ShapeDtypeStruct((N, HWo, Cout), jnp.bfloat16),
        grid=(N,),
        in_specs=[ph_spec] * 4 + [
            pl.BlockSpec((Cin, mid), lambda n: (0, 0)),
            pl.BlockSpec((1, mid), lambda n: (0, 0)),
            pl.BlockSpec((9, mid), lambda n: (0, 0)),
            pl.BlockSpec((1, mid), lambda n: (0, 0)),
            pl.BlockSpec((mid, Cout), lambda n: (0, 0)),
            pl.BlockSpec((1, Cout), lambda n: (0, 0))],
        out_specs=pl.BlockSpec((1, HWo, Cout), lambda n: (n, 0, 0)),
        scratch_shapes=[pltpu.VMEM((4, L, mid), jnp.float32)],
        compiler_params=_cp(),
    )(*phases, blk["pw_w"], blk["pw_b"].reshape(1, mid),
      blk["dw_w"], blk["dw_b"].reshape(1, mid),
      blk["pwl_w"], blk["pwl_b"].reshape(1, Cout))


# ----------------------------------------------------------------------------
# Fused tail: conv_head(1x1 320->1280, BN+ReLU6) + global-avg-pool +
# task MLP + supcon MLP + L2 normalize.  Gridded over batch tiles.
# ----------------------------------------------------------------------------
def fused_tail(y, params):
    N, HW, Cf = y.shape
    BT = 8 if N % 8 == 0 else N
    hw_w = params["head_w"]
    hb = params["head_b"].reshape(1, -1).astype(jnp.float32)
    tw1 = params["task_w1"].astype(jnp.bfloat16)
    tb1 = params["task_b1"].reshape(1, -1).astype(jnp.float32)
    tw2 = params["task_w2"].astype(jnp.bfloat16)
    tb2 = params["task_b2"].reshape(1, -1).astype(jnp.float32)
    sw1 = params["sup_w1"].astype(jnp.bfloat16)
    sb1 = params["sup_b1"].reshape(1, -1).astype(jnp.float32)
    sw2 = params["sup_w2"].astype(jnp.bfloat16)
    sb2 = params["sup_b2"].reshape(1, -1).astype(jnp.float32)
    n_emb = hw_w.shape[1]
    n_task = tw2.shape[1]
    n_sup = sw2.shape[1]

    def kernel(y_ref, hw_ref, hb_ref, tw1_r, tb1_r, tw2_r, tb2_r,
               sw1_r, sb1_r, sw2_r, sb2_r, emb_ref, task_ref, sup_ref):
        inv_hw = 1.0 / HW
        for b in range(BT):
            z = jnp.dot(y_ref[b], hw_ref[...],
                        preferred_element_type=jnp.float32)
            z = jnp.clip(z + hb_ref[...], 0.0, 6.0)         # (HW, 1280)
            emb_ref[b:b + 1, :] = jnp.sum(z, axis=0, keepdims=True) * inv_hw
        emb = emb_ref[...]                                   # (BT, 1280) f32
        # TODO(synk): Dropout layers are eval-mode identity here.
        embb = emb.astype(jnp.bfloat16)
        t = jnp.dot(embb, tw1_r[...], preferred_element_type=jnp.float32)
        t = jnp.maximum(t + tb1_r[...], 0.0)
        task_ref[...] = (jnp.dot(t.astype(jnp.bfloat16), tw2_r[...],
                                 preferred_element_type=jnp.float32)
                         + tb2_r[...])
        s = jnp.dot(embb, sw1_r[...], preferred_element_type=jnp.float32)
        s = jnp.maximum(s + sb1_r[...], 0.0)
        s = (jnp.dot(s.astype(jnp.bfloat16), sw2_r[...],
                     preferred_element_type=jnp.float32) + sb2_r[...])
        ssq = jnp.sum(s * s, axis=1, keepdims=True)
        sup_ref[...] = s * lax.rsqrt(jnp.maximum(ssq, 1e-24))

    def vspec(arr):
        shp = arr.shape
        nd = len(shp)
        return pl.BlockSpec(shp, lambda i, nd=nd: (0,) * nd)

    weights = [hw_w, hb, tw1, tb1, tw2, tb2, sw1, sb1, sw2, sb2]
    return pl.pallas_call(
        kernel,
        out_shape=(jax.ShapeDtypeStruct((N, n_emb), jnp.float32),
                   jax.ShapeDtypeStruct((N, n_task), jnp.float32),
                   jax.ShapeDtypeStruct((N, n_sup), jnp.float32)),
        grid=(N // BT,),
        in_specs=[pl.BlockSpec((BT, HW, Cf), lambda i: (i, 0, 0))]
                 + [vspec(a) for a in weights],
        out_specs=(pl.BlockSpec((BT, n_emb), lambda i: (i, 0)),
                   pl.BlockSpec((BT, n_task), lambda i: (i, 0)),
                   pl.BlockSpec((BT, n_sup), lambda i: (i, 0))),
        compiler_params=_cp(),
    )(y, *weights)


# ----------------------------------------------------------------------------
# Deterministic synthetic parameter init (mobilenetv2_100 shapes), BN folded.
# ----------------------------------------------------------------------------
class KeyGen:
    def __init__(self, key):
        self.key = key

    def __call__(self):
        self.key, sub = jax.random.split(self.key)
        return sub


def _bn_fold(key, c):
    k1, k2 = jax.random.split(key)
    gamma = 1.0 + 0.05 * jax.random.normal(k1, (c,), jnp.float32)
    beta = 0.05 * jax.random.normal(k2, (c,), jnp.float32)
    eps = 1e-5  # running_mean = 0, running_var = 1 (eval-mode BN)
    return gamma / jnp.sqrt(1.0 + eps), beta


def _conv1x1(key, cin, cout):
    return jax.random.normal(key, (cin, cout), jnp.float32) * (2.0 / cin) ** 0.5


def _linear(key, cin, cout):
    kw, kb = jax.random.split(key)
    bound = 1.0 / cin ** 0.5
    w = jax.random.uniform(kw, (cin, cout), jnp.float32, -bound, bound)
    b = jax.random.uniform(kb, (cout,), jnp.float32, -bound, bound)
    return w, b


# MobileNetV2 (width 1.0) inverted-residual settings: (expand, out_c, n, stride)
_IR_SETTINGS = [
    (1, 16, 1, 1),
    (6, 24, 2, 2),
    (6, 32, 3, 2),
    (6, 64, 4, 2),
    (6, 96, 3, 1),
    (6, 160, 3, 2),
    (6, 320, 1, 1),
]


def init_params(seed=0):
    kg = KeyGen(jax.random.PRNGKey(seed))
    p = {}
    # conv_stem: 3x3, stride 2, 3 -> 32 (im2col weight (27, 32)), BN folded.
    w = jax.random.normal(kg(), (27, 32), jnp.float32) * (2.0 / 27.0) ** 0.5
    s, b = _bn_fold(kg(), 32)
    p["stem_w"] = (w * s[None, :]).astype(jnp.bfloat16)
    p["stem_b"] = b

    blocks = []
    cin = 32
    for t, c, n, strd in _IR_SETTINGS:
        for i in range(n):
            stride = strd if i == 0 else 1
            mid = cin * t
            blk = {"stride": stride, "in": cin, "out": c, "expand": t}
            if t != 1:
                w = _conv1x1(kg(), cin, mid)
                s, b = _bn_fold(kg(), mid)
                blk["pw_w"] = (w * s[None, :]).astype(jnp.bfloat16)
                blk["pw_b"] = b
            w = jax.random.normal(kg(), (9, mid), jnp.float32) * (2.0 / 9.0) ** 0.5
            s, b = _bn_fold(kg(), mid)
            blk["dw_w"] = w * s[None, :]            # (9, mid) f32, scale folded
            blk["dw_b"] = b
            w = _conv1x1(kg(), mid, c)
            s, b = _bn_fold(kg(), c)
            blk["pwl_w"] = (w * s[None, :]).astype(jnp.bfloat16)
            blk["pwl_b"] = b
            blocks.append(blk)
            cin = c
    p["blocks"] = blocks

    # conv_head: 1x1, 320 -> 1280
    w = _conv1x1(kg(), 320, 1280)
    s, b = _bn_fold(kg(), 1280)
    p["head_w"] = (w * s[None, :]).astype(jnp.bfloat16)
    p["head_b"] = b

    # task / supcon heads
    p["task_w1"], p["task_b1"] = _linear(kg(), 1280, 32)
    p["task_w2"], p["task_b2"] = _linear(kg(), 32, 2)
    p["sup_w1"], p["sup_b1"] = _linear(kg(), 1280, 32)
    p["sup_w2"], p["sup_b2"] = _linear(kg(), 32, 32)
    return p


# ----------------------------------------------------------------------------
# Forward pass
# ----------------------------------------------------------------------------
def forward(params, x_nchw):
    # PyTorch NCHW -> NHWC (channels on TPU lanes)
    x = jnp.transpose(x_nchw, (0, 2, 3, 1)).astype(jnp.float32)
    N, H, W, C = x.shape

    # conv_stem (3x3, s2, pad1) via host im2col + fused Pallas matmul + ReLU6
    xp = jnp.pad(x, ((0, 0), (1, 1), (1, 1), (0, 0)))
    Ho, Wo = (H + 1) // 2, (W + 1) // 2
    cols = jnp.concatenate(
        [xp[:, dy:dy + 2 * Ho:2, dx:dx + 2 * Wo:2, :]
         for dy in range(3) for dx in range(3)], axis=-1)       # (N,Ho,Wo,27)
    y = fused_matmul_relu6(cols.reshape(N * Ho * Wo, 9 * C),
                           params["stem_w"], params["stem_b"])
    y = y.reshape(N, Ho * Wo, 32)
    Hc, Wc = Ho, Wo

    # fused inverted-residual blocks (expanded activations stay in VMEM)
    for blk in params["blocks"]:
        if blk["stride"] == 1:
            y = fused_ir_block_s1(y, Hc, Wc, blk)
        else:
            y = fused_ir_block_s2(y, Hc, Wc, blk)
            Hc, Wc = Hc // 2, Wc // 2

    # conv_head + GAP + task / supcon heads + L2 norm (one fused kernel)
    embedding, task_output, supcon_output = fused_tail(y, params)
    return {"output": task_output, "embedding": embedding,
            "supCon_output": supcon_output}


if __name__ == "__main__":
    key = jax.random.PRNGKey(0)
    x = jax.random.normal(key, (2, 3, 32, 32), jnp.float32)   # small NCHW input
    params = init_params(seed=0)
    out = forward(params, x)
    jax.block_until_ready(out)
    assert out["output"].shape == (2, 2)
    assert out["embedding"].shape == (2, 1280)
    assert out["supCon_output"].shape == (2, 32)
    print("KERNEL_OK")
</pallas_src>

<mosaic_0001>
module attributes {stable_mosaic.version = 11 : i64} {
  func.func @kernel(%arg0: i32, %arg1: memref<512x27xbf16, #tpu.memory_space<vmem>>, %arg2: memref<27x32xbf16, #tpu.memory_space<vmem>>, %arg3: memref<1x32xf32, #tpu.memory_space<vmem>>, %arg4: memref<512x32xbf16, #tpu.memory_space<vmem>>) attributes {dimension_semantics = [#tpu.dimension_semantics<parallel>], iteration_bounds = array<i64: 1>, scalar_prefetch = 0 : i64, scratch_operands = 0 : i64, tpu.core_type = #tpu.core_type<tc>, window_params = [{transform_indices = @transform_0, window_bounds = array<i64: 512, 27>}, {pipeline_mode = #tpu.pipeline_mode<synchronous>, transform_indices = @transform_1, window_bounds = array<i64: 27, 32>}, {pipeline_mode = #tpu.pipeline_mode<synchronous>, transform_indices = @transform_2, window_bounds = array<i64: 1, 32>}, {transform_indices = @transform_3, window_bounds = array<i64: 512, 32>}]} {
    %c0 = arith.constant 0 : index
    %c0_0 = arith.constant 0 : index
    %0 = vector.load %arg1[%c0, %c0_0] : memref<512x27xbf16, #tpu.memory_space<vmem>>, vector<512x27xbf16>
    %c0_1 = arith.constant 0 : index
    %c0_2 = arith.constant 0 : index
    %1 = vector.load %arg2[%c0_1, %c0_2] : memref<27x32xbf16, #tpu.memory_space<vmem>>, vector<27x32xbf16>
    %cst = arith.constant dense<0.000000e+00> : vector<512x32xf32>
    %2 = tpu.matmul %0, %1, %cst {dimension_numbers = #tpu.dot_dimension_numbers<[1], [0], [0], [1], [0, 0, 1, 1], [], []>} : vector<512x27xbf16>, vector<27x32xbf16>, vector<512x32xf32> -> vector<512x32xf32>
    %c0_3 = arith.constant 0 : index
    %c0_4 = arith.constant 0 : index
    %3 = vector.load %arg3[%c0_3, %c0_4] : memref<1x32xf32, #tpu.memory_space<vmem>>, vector<1x32xf32>
    %4 = vector.broadcast %3 : vector<1x32xf32> to vector<512x32xf32>
    %5 = arith.addf %2, %4 : vector<512x32xf32>
    %cst_5 = arith.constant 0.000000e+00 : f32
    %cst_6 = arith.constant 6.000000e+00 : f32
    %6 = vector.broadcast %cst_5 : f32 to vector<512x32xf32>
    %7 = arith.maximumf %6, %5 : vector<512x32xf32>
    %8 = vector.broadcast %cst_6 : f32 to vector<512x32xf32>
    %9 = arith.minimumf %8, %7 : vector<512x32xf32>
    %10 = arith.truncf %9 : vector<512x32xf32> to vector<512x32xbf16>
    %c0_7 = arith.constant 0 : index
    %c0_8 = arith.constant 0 : index
    %11 = vector.load %arg4[%c0_7, %c0_8] : memref<512x32xbf16, #tpu.memory_space<vmem>>, vector<512x32xbf16>
    tpu.vector_store %arg4[%c0_7, %c0_8], %10 {strides = array<i32>} : memref<512x32xbf16, #tpu.memory_space<vmem>>, vector<512x32xbf16>,
    return
  }
  func.func @transform_0(%arg0: i32) -> (i32, i32) {
    %c0_i32 = arith.constant 0 : i32
    %c0_i32_0 = arith.constant 0 : i32
    return %arg0, %c0_i32 : i32, i32
  }
  func.func @transform_1(%arg0: i32) -> (i32, i32) {
    %c0_i32 = arith.constant 0 : i32
    %c0_i32_0 = arith.constant 0 : i32
    %c0_i32_1 = arith.constant 0 : i32
    return %c0_i32, %c0_i32_0 : i32, i32
  }
  func.func @transform_2(%arg0: i32) -> (i32, i32) {
    %c0_i32 = arith.constant 0 : i32
    %c0_i32_0 = arith.constant 0 : i32
    %c0_i32_1 = arith.constant 0 : i32
    return %c0_i32, %c0_i32_0 : i32, i32
  }
  func.func @transform_3(%arg0: i32) -> (i32, i32) {
    %c0_i32 = arith.constant 0 : i32
    %c0_i32_0 = arith.constant 0 : i32
    return %arg0, %c0_i32 : i32, i32
  }
}

</mosaic_0001>

<llo_original>
// kernel: tpu_custom_call.1
$region0: #{tpu_custom_call.1}
  #allocation0 [shape = 'u32[]', space=smem, size = 0x4, offset = 0x4, fixed_abs, tag = 'smem constant byte address 0x4 - core index']
  #allocation1 [shape = 'u32[144,128]{1,0:T(1,128)}', space=vmem, size = 0x12000, scoped, tag = 'internal scratch']
  %s0 = inlined_call_operand.vmem [shape: bf16[512,27], index: 0, kind: input, shape index: {}]
  %s1 = inlined_call_operand.vmem [shape: bf16[27,32], index: 1, kind: input, shape index: {}]
  %s2 = inlined_call_operand.vmem [shape: f32[1,32], index: 2, kind: input, shape index: {}]
  %s3 = inlined_call_operand.vmem [shape: bf16[512,32], index: 3, kind: output, shape index: {}]
  %s4 = sld [smem:[#allocation0]]
  $region22: #{tpu_custom_call.1} parent=0
    _
  %s6 = ssub.s32 1, %s4
  %s7 = scalar_select 0, %s6, %s4
  // Predicated region
  $region2: #{tpu_custom_call.1} parent=0 // pred_check
    _
  $region3: #{tpu_custom_call.1} parent=0 // pred_check_branch
    %9 = sbr.rel (0) target = $region5
  $region4: #{tpu_custom_call.1} parent=0 // pred_region
    _
  $region5: #{tpu_custom_call.1} parent=0 // pred_fallthru
    _
  // Predicated region
  $region6: #{tpu_custom_call.1} parent=0 // pred_check
    _
  $region7: #{tpu_custom_call.1} parent=0 // pred_check_branch
    %11 = sbr.rel (0) target = $region9
  $region8: #{tpu_custom_call.1} parent=0 // pred_region
    _
  $region9: #{tpu_custom_call.1} parent=0 // pred_fallthru
    _
  // Predicated region
  $region10: #{tpu_custom_call.1} parent=0 // pred_check
    _
  $region11: #{tpu_custom_call.1} parent=0 // pred_check_branch
    %13 = sbr.rel (0) target = $region13
  $region12: #{tpu_custom_call.1} parent=0 // pred_region
    _
  $region13: #{tpu_custom_call.1} parent=0 // pred_fallthru
    _
  %v15 = vld [vmem:[%s0] sm:$0xf]
  %v16 = vld [vmem:[%s0 + $0x4] sm:$0xf]
  %v17 = vld [vmem:[%s0 + $0x8] sm:$0xf]
  %v18 = vld [vmem:[%s0 + $0xc] sm:$0xf]
  %v19 = vld [vmem:[%s0 + $0x10] sm:$0xf]
  %v20 = vld [vmem:[%s0 + $0x14] sm:$0xf]
  %v21 = vld [vmem:[%s0 + $0x18] sm:$0xf]
  %v22 = vld [vmem:[%s0 + $0x1c] sm:$0xf]
  %v23 = vld [vmem:[%s0 + $0x20] sm:$0xf]
  %v24 = vld [vmem:[%s0 + $0x24] sm:$0xf]
  %v25 = vld [vmem:[%s0 + $0x28] sm:$0xf]
  %v26 = vld [vmem:[%s0 + $0x2c] sm:$0xf]
  %v27 = vld [vmem:[%s0 + $0x30] sm:$0xf]
  %v28 = vld [vmem:[%s0 + $0x34] sm:$0xf]
  %v29 = vld [vmem:[%s0 + $0x38] sm:$0xf]
  %v30 = vld [vmem:[%s0 + $0x3c] sm:$0xf]
  %v31 = vld [vmem:[%s0 + $0x40] sm:$0xf]
  %v32 = vld [vmem:[%s0 + $0x44] sm:$0xf]
  %v33 = vld [vmem:[%s0 + $0x48] sm:$0xf]
  %v34 = vld [vmem:[%s0 + $0x4c] sm:$0xf]
  %v35 = vld [vmem:[%s0 + $0x50] sm:$0xf]
  %v36 = vld [vmem:[%s0 + $0x54] sm:$0xf]
  %v37 = vld [vmem:[%s0 + $0x58] sm:$0xf]
  %v38 = vld [vmem:[%s0 + $0x5c] sm:$0xf]
  %v39 = vld [vmem:[%s0 + $0x60] sm:$0xf]
  %v40 = vld [vmem:[%s0 + $0x64] sm:$0xf]
  %v41 = vld [vmem:[%s0 + $0x68] sm:$0xf]
  %v42 = vld [vmem:[%s0 + $0x6c] sm:$0xf]
  %v43 = vld [vmem:[%s0 + $0x70] sm:$0xf]
  %v44 = vld [vmem:[%s0 + $0x74] sm:$0xf]
  %v45 = vld [vmem:[%s0 + $0x78] sm:$0xf]
  %v46 = vld [vmem:[%s0 + $0x7c] sm:$0xf]
  %v47 = vld [vmem:[%s0 + $0x80] sm:$0xf]
  %v48 = vld [vmem:[%s0 + $0x84] sm:$0xf]
  %v49 = vld [vmem:[%s0 + $0x88] sm:$0xf]
  %v50 = vld [vmem:[%s0 + $0x8c] sm:$0xf]
  %v51 = vld [vmem:[%s0 + $0x90] sm:$0xf]
  %v52 = vld [vmem:[%s0 + $0x94] sm:$0xf]
  %v53 = vld [vmem:[%s0 + $0x98] sm:$0xf]
  %v54 = vld [vmem:[%s0 + $0x9c] sm:$0xf]
  %v55 = vld [vmem:[%s0 + $0xa0] sm:$0xf]
  %v56 = vld [vmem:[%s0 + $0xa4] sm:$0xf]
  %v57 = vld [vmem:[%s0 + $0xa8] sm:$0xf]
  %v58 = vld [vmem:[%s0 + $0xac] sm:$0xf]
  %v59 = vld [vmem:[%s0 + $0xb0] sm:$0xf]
  %v60 = vld [vmem:[%s0 + $0xb4] sm:$0xf]
  %v61 = vld [vmem:[%s0 + $0xb8] sm:$0xf]
  %v62 = vld [vmem:[%s0 + $0xbc] sm:$0xf]
  %v63 = vld [vmem:[%s0 + $0xc0] sm:$0xf]
  %v64 = vld [vmem:[%s0 + $0xc4] sm:$0xf]
  %v65 = vld [vmem:[%s0 + $0xc8] sm:$0xf]
  %v66 = vld [vmem:[%s0 + $0xcc] sm:$0xf]
  %v67 = vld [vmem:[%s0 + $0xd0] sm:$0xf]
  %v68 = vld [vmem:[%s0 + $0xd4] sm:$0xf]
  %v69 = vld [vmem:[%s0 + $0xd8] sm:$0xf]
  %v70 = vld [vmem:[%s0 + $0xdc] sm:$0xf]
  %v71 = vld [vmem:[%s0 + $0xe0] sm:$0xf]
  %v72 = vld [vmem:[%s0 + $0xe4] sm:$0xf]
  %v73 = vld [vmem:[%s0 + $0xe8] sm:$0xf]
  %v74 = vld [vmem:[%s0 + $0xec] sm:$0xf]
  %v75 = vld [vmem:[%s0 + $0xf0] sm:$0xf]
  %v76 = vld [vmem:[%s0 + $0xf4] sm:$0xf]
  %v77 = vld [vmem:[%s0 + $0xf8] sm:$0xf]
  %v78 = vld [vmem:[%s0 + $0xfc] sm:$0xf]
  %v79 = vld [vmem:[%s1] sm:$0xf]
  %v80 = vld [vmem:[%s1 + $0x4] sm:$0xf]
  %v81 = vld [vmem:[%s1 + $0x8] sm:$0xf]
  %v82 = vld [vmem:[%s1 + $0xc] sm:$0x3]
  %v83 = vld [vmem:[%s2] sm:$0x1]
  %v85 = vlaneseq
  %v86 = vshrl.u32 %v85, 7
  %v87 = vsub.s32 0, %v86
  %v88 = vrot.slane %v83, %v87
  %v154 = vunpack.c.l.b16 %v15
  %v155 = vunpack.c.l.b16 %v16
  %v156 = vunpack.c.l.b16 %v17
  %v157 = vunpack.c.l.b16 %v18
  %v158 = vunpack.c.l.b16 %v19
  %v159 = vunpack.c.l.b16 %v20
  %v160 = vunpack.c.l.b16 %v21
  %v161 = vunpack.c.l.b16 %v22
  %v162 = vunpack.c.l.b16 %v23
  %v163 = vunpack.c.l.b16 %v24
  %v164 = vunpack.c.l.b16 %v25
  %v165 = vunpack.c.l.b16 %v26
  %v166 = vunpack.c.l.b16 %v27
  %v167 = vunpack.c.l.b16 %v28
  %v168 = vunpack.c.l.b16 %v29
  %v169 = vunpack.c.l.b16 %v30
  %v170 = vunpack.c.l.b16 %v31
  %v171 = vunpack.c.l.b16 %v32
  %v172 = vunpack.c.l.b16 %v33
  %v173 = vunpack.c.l.b16 %v34
  %v174 = vunpack.c.l.b16 %v35
  %v175 = vunpack.c.l.b16 %v36
  %v176 = vunpack.c.l.b16 %v37
  %v177 = vunpack.c.l.b16 %v38
  %v178 = vunpack.c.l.b16 %v39
  %v179 = vunpack.c.l.b16 %v40
  %v180 = vunpack.c.l.b16 %v41
  %v181 = vunpack.c.l.b16 %v42
  %v182 = vunpack.c.l.b16 %v43
  %v183 = vunpack.c.l.b16 %v44
  %v184 = vunpack.c.l.b16 %v45
  %v185 = vunpack.c.l.b16 %v46
  %v186 = vunpack.c.l.b16 %v47
  %v187 = vunpack.c.l.b16 %v48
  %v188 = vunpack.c.l.b16 %v49
  %v189 = vunpack.c.l.b16 %v50
  %v190 = vunpack.c.l.b16 %v51
  %v191 = vunpack.c.l.b16 %v52
  %v192 = vunpack.c.l.b16 %v53
  %v193 = vunpack.c.l.b16 %v54
  %v194 = vunpack.c.l.b16 %v55
  %v195 = vunpack.c.l.b16 %v56
  %v196 = vunpack.c.l.b16 %v57
  %v197 = vunpack.c.l.b16 %v58
  %v198 = vunpack.c.l.b16 %v59
  %v199 = vunpack.c.l.b16 %v60
  %v200 = vunpack.c.l.b16 %v61
  %v201 = vunpack.c.l.b16 %v62
  %v202 = vunpack.c.l.b16 %v63
  %v203 = vunpack.c.l.b16 %v64
  %v204 = vunpack.c.l.b16 %v65
  %v205 = vunpack.c.l.b16 %v66
  %v206 = vunpack.c.l.b16 %v67
  %v207 = vunpack.c.l.b16 %v68
  %v208 = vunpack.c.l.b16 %v69
  %v209 = vunpack.c.l.b16 %v70
  %v210 = vunpack.c.l.b16 %v71
  %v211 = vunpack.c.l.b16 %v72
  %v212 = vunpack.c.l.b16 %v73
  %v213 = vunpack.c.l.b16 %v74
  %v214 = vunpack.c.l.b16 %v75
  %v215 = vunpack.c.l.b16 %v76
  %v216 = vunpack.c.l.b16 %v77
  %v217 = vunpack.c.l.b16 %v78
  %v218 = vpack.c.b16 %v155, %v154
  %v219 = vpack.c.b16 %v157, %v156
  %v220 = vpack.c.b16 %v159, %v158
  %v221 = vpack.c.b16 %v161, %v160
  %v222 = vpack.c.b16 %v163, %v162
  %v223 = vpack.c.b16 %v165, %v164
  %v224 = vpack.c.b16 %v167, %v166
  %v225 = vpack.c.b16 %v169, %v168
  %v226 = vpack.c.b16 %v171, %v170
  %v227 = vpack.c.b16 %v173, %v172
  %v228 = vpack.c.b16 %v175, %v174
  %v229 = vpack.c.b16 %v177, %v176
  %v230 = vpack.c.b16 %v179, %v178
  %v231 = vpack.c.b16 %v181, %v180
  %v232 = vpack.c.b16 %v183, %v182
  %v233 = vpack.c.b16 %v185, %v184
  %v234 = vpack.c.b16 %v187, %v186
  %v235 = vpack.c.b16 %v189, %v188
  %v236 = vpack.c.b16 %v191, %v190
  %v237 = vpack.c.b16 %v193, %v192
  %v238 = vpack.c.b16 %v195, %v194
  %v239 = vpack.c.b16 %v197, %v196
  %v240 = vpack.c.b16 %v199, %v198
  %v241 = vpack.c.b16 %v201, %v200
  %v242 = vpack.c.b16 %v203, %v202
  %v243 = vpack.c.b16 %v205, %v204
  %v244 = vpack.c.b16 %v207, %v206
  %v245 = vpack.c.b16 %v209, %v208
  %v246 = vpack.c.b16 %v211, %v210
  %v247 = vpack.c.b16 %v213, %v212
  %v248 = vpack.c.b16 %v215, %v214
  %v249 = vpack.c.b16 %v217, %v216
  %v254 = vunpack.c.l.b16 %v79
  %v255 = vunpack.c.l.b16 %v80
  %v256 = vunpack.c.l.b16 %v81
  %v257 = vunpack.c.l.b16 %v82
  %v258 = vpack.c.b16 %v255, %v254
  %v259 = vpack.c.b16 %v257, %v256
  %vm261 = vcmask 220160
  %v263 = vsel %vm261, %v218, 0
  %v266 = vsel %vm261, %v219, 0
  %v269 = vsel %vm261, %v220, 0
  %v272 = vsel %vm261, %v221, 0
  %v275 = vsel %vm261, %v222, 0
  %v278 = vsel %vm261, %v223, 0
  %v281 = vsel %vm261, %v224, 0
  %v284 = vsel %vm261, %v225, 0
  %v287 = vsel %vm261, %v226, 0
  %v290 = vsel %vm261, %v227, 0
  %v293 = vsel %vm261, %v228, 0
  %v296 = vsel %vm261, %v229, 0
  %v299 = vsel %vm261, %v230, 0
  %v302 = vsel %vm261, %v231, 0
  %v305 = vsel %vm261, %v232, 0
  %v308 = vsel %vm261, %v233, 0
  %v311 = vsel %vm261, %v234, 0
  %v314 = vsel %vm261, %v235, 0
  %v317 = vsel %vm261, %v236, 0
  %v320 = vsel %vm261, %v237, 0
  %v323 = vsel %vm261, %v238, 0
  %v326 = vsel %vm261, %v239, 0
  %v329 = vsel %vm261, %v240, 0
  %v332 = vsel %vm261, %v241, 0
  %v335 = vsel %vm261, %v242, 0
  %v338 = vsel %vm261, %v243, 0
  %v341 = vsel %vm261, %v244, 0
  %v344 = vsel %vm261, %v245, 0
  %v347 = vsel %vm261, %v246, 0
  %v350 = vsel %vm261, %v247, 0
  %v353 = vsel %vm261, %v248, 0
  %v356 = vsel %vm261, %v249, 0
  %vm358 = vcmask 1044480
  %vm359 = vcmask 1045504
  %v360 = vsel %vm358, 4294967295, 65535
  %v361 = vsel %vm359, %v360, 0
  %v363 = vand.u32 %v259, %v361
  %365 = vmatprep.subr.bf16.mxu0 0
  %366 = vmatpush1.bf16.msra.mxu0 %v258
  %367 = vmatprep.subr.bf16.mxu0 0
  %368 = vmatpush1.bf16.msra.mxu0 %v363
  %369 = vmatprep.subr.bf16.mxu0 0
  %370 = vmatpush1.bf16.msra.mxu0 0
  %371 = vmatprep.subr.bf16.mxu0 0
  %372 = vmatpush1.bf16.msra.mxu0 0
  %373 = vmatprep.subr.bf16.mxu0 0
  %374 = vmatpush1.bf16.msra.mxu0 0
  %375 = vmatprep.subr.bf16.mxu0 0
  %376 = vmatpush1.bf16.msra.mxu0 0
  %377 = vmatprep.subr.bf16.mxu0 0
  %378 = vmatpush1.bf16.msra.mxu0 0
  %379 = vmatprep.subr.bf16.mxu0 0
  %380 = vmatpush1.bf16.msra.mxu0 0
  %381 = vmatprep.subr.bf16.mxu0 0
  %382 = vmatpush1.bf16.msra.mxu0 0
  %383 = vmatprep.subr.bf16.mxu0 0
  %384 = vmatpush1.bf16.msra.mxu0 0
  %385 = vmatprep.subr.bf16.mxu0 0
  %386 = vmatpush1.bf16.msra.mxu0 0
  %387 = vmatprep.subr.bf16.mxu0 0
  %388 = vmatpush1.bf16.msra.mxu0 0
  %389 = vmatprep.subr.bf16.mxu0 0
  %390 = vmatpush1.bf16.msra.mxu0 0
  %391 = vmatprep.subr.bf16.mxu0 0
  %392 = vmatpush1.bf16.msra.mxu0 0
  %393 = vmatprep.subr.bf16.mxu0 0
  %394 = vmatpush1.bf16.msra.mxu0 0
  %395 = vmatprep.subr.bf16.mxu0 0
  %396 = vmatpush1.bf16.msra.mxu0 0
  %397 = vmatprep.mubr.bf16.mxu0 0
  %398 = vmatmul.mubr.bf16.gmra.mrb[0].mxu0 %v263
  %v399 = vpop.f32.mrb[0].mxu0
  %v400 = vadd.f32 %v88, %v399
  %v401 = vpop.f32.mrb[0].mxu0
  %v402 = vpop.f32.mrb[0].mxu0
  %v403 = vadd.f32 %v88, %v402
  %v404 = vpop.f32.mrb[0].mxu0
  %405 = vmatprep.mubr.bf16.mxu0 0
  %406 = vmatmul.mubr.bf16.gmra.mrb[0].mxu0 %v266
  %v407 = vpop.f32.mrb[0].mxu0
  %v408 = vadd.f32 %v88, %v407
  %v409 = vpop.f32.mrb[0].mxu0
  %v410 = vpop.f32.mrb[0].mxu0
  %v411 = vadd.f32 %v88, %v410
  %v412 = vpop.f32.mrb[0].mxu0
  %413 = vmatprep.mubr.bf16.mxu0 0
  %414 = vmatmul.mubr.bf16.gmra.mrb[0].mxu0 %v269
  %v415 = vpop.f32.mrb[0].mxu0
  %v416 = vadd.f32 %v88, %v415
  %v417 = vpop.f32.mrb[0].mxu0
  %v418 = vpop.f32.mrb[0].mxu0
  %v419 = vadd.f32 %v88, %v418
  %v420 = vpop.f32.mrb[0].mxu0
  %421 = vmatprep.mubr.bf16.mxu0 0
  %422 = vmatmul.mubr.bf16.gmra.mrb[0].mxu0 %v272
  %v423 = vpop.f32.mrb[0].mxu0
  %v424 = vadd.f32 %v88, %v423
  %v425 = vpop.f32.mrb[0].mxu0
  %v426 = vpop.f32.mrb[0].mxu0
  %v427 = vadd.f32 %v88, %v426
  %v428 = vpop.f32.mrb[0].mxu0
  %429 = vmatprep.mubr.bf16.mxu0 0
  %430 = vmatmul.mubr.bf16.gmra.mrb[0].mxu0 %v275
  %v431 = vpop.f32.mrb[0].mxu0
  %v432 = vadd.f32 %v88, %v431
  %v433 = vpop.f32.mrb[0].mxu0
  %v434 = vpop.f32.mrb[0].mxu0
  %v435 = vadd.f32 %v88, %v434
  %v436 = vpop.f32.mrb[0].mxu0
  %437 = vmatprep.mubr.bf16.mxu0 0
  %438 = vmatmul.mubr.bf16.gmra.mrb[0].mxu0 %v278
  %v439 = vpop.f32.mrb[0].mxu0
  %v440 = vadd.f32 %v88, %v439
  %v441 = vpop.f32.mrb[0].mxu0
  %v442 = vpop.f32.mrb[0].mxu0
  %v443 = vadd.f32 %v88, %v442
  %v444 = vpop.f32.mrb[0].mxu0
  %445 = vmatprep.mubr.bf16.mxu0 0
  %446 = vmatmul.mubr.bf16.gmra.mrb[0].mxu0 %v281
  %v447 = vpop.f32.mrb[0].mxu0
  %v448 = vadd.f32 %v88, %v447
  %v449 = vpop.f32.mrb[0].mxu0
  %v450 = vpop.f32.mrb[0].mxu0
  %v451 = vadd.f32 %v88, %v450
  %v452 = vpop.f32.mrb[0].mxu0
  %453 = vmatprep.mubr.bf16.mxu0 0
  %454 = vmatmul.mubr.bf16.gmra.mrb[0].mxu0 %v284
  %v455 = vpop.f32.mrb[0].mxu0
  %v456 = vadd.f32 %v88, %v455
  %v457 = vpop.f32.mrb[0].mxu0
  %v458 = vpop.f32.mrb[0].mxu0
  %v459 = vadd.f32 %v88, %v458
  %v460 = vpop.f32.mrb[0].mxu0
  %461 = vmatprep.mubr.bf16.mxu0 0
  %462 = vmatmul.mubr.bf16.gmra.mrb[0].mxu0 %v287
  %v463 = vpop.f32.mrb[0].mxu0
  %v464 = vadd.f32 %v88, %v463
  %v465 = vpop.f32.mrb[0].mxu0
  %v466 = vpop.f32.mrb[0].mxu0
  %v467 = vadd.f32 %v88, %v466
  %v468 = vpop.f32.mrb[0].mxu0
  %469 = vmatprep.mubr.bf16.mxu0 0
  %470 = vmatmul.mubr.bf16.gmra.mrb[0].mxu0 %v290
  %v471 = vpop.f32.mrb[0].mxu0
  %v472 = vadd.f32 %v88, %v471
  %v473 = vpop.f32.mrb[0].mxu0
  %v474 = vpop.f32.mrb[0].mxu0
  %v475 = vadd.f32 %v88, %v474
  %v476 = vpop.f32.mrb[0].mxu0
  %477 = vmatprep.mubr.bf16.mxu0 0
  %478 = vmatmul.mubr.bf16.gmra.mrb[0].mxu0 %v293
  %v479 = vpop.f32.mrb[0].mxu0
  %v480 = vadd.f32 %v88, %v479
  %v481 = vpop.f32.mrb[0].mxu0
  %v482 = vpop.f32.mrb[0].mxu0
  %v483 = vadd.f32 %v88, %v482
  %v484 = vpop.f32.mrb[0].mxu0
  %485 = vmatprep.mubr.bf16.mxu0 0
  %486 = vmatmul.mubr.bf16.gmra.mrb[0].mxu0 %v296
  %v487 = vpop.f32.mrb[0].mxu0
  %v488 = vadd.f32 %v88, %v487
  %v489 = vpop.f32.mrb[0].mxu0
  %v490 = vpop.f32.mrb[0].mxu0
  %v491 = vadd.f32 %v88, %v490
  %v492 = vpop.f32.mrb[0].mxu0
  %493 = vmatprep.mubr.bf16.mxu0 0
  %494 = vmatmul.mubr.bf16.gmra.mrb[0].mxu0 %v299
  %v495 = vpop.f32.mrb[0].mxu0
  %v496 = vadd.f32 %v88, %v495
  %v497 = vpop.f32.mrb[0].mxu0
  %v498 = vpop.f32.mrb[0].mxu0
  %v499 = vadd.f32 %v88, %v498
  %v500 = vpop.f32.mrb[0].mxu0
  %501 = vmatprep.mubr.bf16.mxu0 0
  %502 = vmatmul.mubr.bf16.gmra.mrb[0].mxu0 %v302
  %v503 = vpop.f32.mrb[0].mxu0
  %v504 = vadd.f32 %v88, %v503
  %v505 = vpop.f32.mrb[0].mxu0
  %v506 = vpop.f32.mrb[0].mxu0
  %v507 = vadd.f32 %v88, %v506
  %v508 = vpop.f32.mrb[0].mxu0
  %509 = vmatprep.mubr.bf16.mxu0 0
  %510 = vmatmul.mubr.bf16.gmra.mrb[0].mxu0 %v305
  %v511 = vpop.f32.mrb[0].mxu0
  %v512 = vadd.f32 %v88, %v511
  %v513 = vpop.f32.mrb[0].mxu0
  %v514 = vpop.f32.mrb[0].mxu0
  %v515 = vadd.f32 %v88, %v514
  %v516 = vpop.f32.mrb[0].mxu0
  %517 = vmatprep.mubr.bf16.mxu0 0
  %518 = vmatmul.mubr.bf16.gmra.mrb[0].mxu0 %v308
  %v519 = vpop.f32.mrb[0].mxu0
  %v520 = vadd.f32 %v88, %v519
  %v521 = vpop.f32.mrb[0].mxu0
  %v522 = vpop.f32.mrb[0].mxu0
  %v523 = vadd.f32 %v88, %v522
  %v524 = vpop.f32.mrb[0].mxu0
  %525 = vmatprep.mubr.bf16.mxu0 0
  %526 = vmatmul.mubr.bf16.gmra.mrb[0].mxu0 %v311
  %v527 = vpop.f32.mrb[0].mxu0
  %v528 = vadd.f32 %v88, %v527
  %v529 = vpop.f32.mrb[0].mxu0
  %v530 = vpop.f32.mrb[0].mxu0
  %v531 = vadd.f32 %v88, %v530
  %v532 = vpop.f32.mrb[0].mxu0
  %533 = vmatprep.mubr.bf16.mxu0 0
  %534 = vmatmul.mubr.bf16.gmra.mrb[0].mxu0 %v314
  %v535 = vpop.f32.mrb[0].mxu0
  %v536 = vadd.f32 %v88, %v535
  %v537 = vpop.f32.mrb[0].mxu0
  %v538 = vpop.f32.mrb[0].mxu0
  %v539 = vadd.f32 %v88, %v538
  %v540 = vpop.f32.mrb[0].mxu0
  %541 = vmatprep.mubr.bf16.mxu0 0
  %542 = vmatmul.mubr.bf16.gmra.mrb[0].mxu0 %v317
  %v543 = vpop.f32.mrb[0].mxu0
  %v544 = vadd.f32 %v88, %v543
  %v545 = vpop.f32.mrb[0].mxu0
  %v546 = vpop.f32.mrb[0].mxu0
  %v547 = vadd.f32 %v88, %v546
  %v548 = vpop.f32.mrb[0].mxu0
  %549 = vmatprep.mubr.bf16.mxu0 0
  %550 = vmatmul.mubr.bf16.gmra.mrb[0].mxu0 %v320
  %v551 = vpop.f32.mrb[0].mxu0
  %v552 = vadd.f32 %v88, %v551
  %v553 = vpop.f32.mrb[0].mxu0
  %v554 = vpop.f32.mrb[0].mxu0
  %v555 = vadd.f32 %v88, %v554
  %v556 = vpop.f32.mrb[0].mxu0
  %557 = vmatprep.mubr.bf16.mxu0 0
  %558 = vmatmul.mubr.bf16.gmra.mrb[0].mxu0 %v323
  %v559 = vpop.f32.mrb[0].mxu0
  %v560 = vadd.f32 %v88, %v559
  %v561 = vpop.f32.mrb[0].mxu0
  %v562 = vpop.f32.mrb[0].mxu0
  %v563 = vadd.f32 %v88, %v562
  %v564 = vpop.f32.mrb[0].mxu0
  %565 = vmatprep.mubr.bf16.mxu0 0
  %566 = vmatmul.mubr.bf16.gmra.mrb[0].mxu0 %v326
  %v567 = vpop.f32.mrb[0].mxu0
  %v568 = vadd.f32 %v88, %v567
  %v569 = vpop.f32.mrb[0].mxu0
  %v570 = vpop.f32.mrb[0].mxu0
  %v571 = vadd.f32 %v88, %v570
  %v572 = vpop.f32.mrb[0].mxu0
  %573 = vmatprep.mubr.bf16.mxu0 0
  %574 = vmatmul.mubr.bf16.gmra.mrb[0].mxu0 %v329
  %v575 = vpop.f32.mrb[0].mxu0
  %v576 = vadd.f32 %v88, %v575
  %v577 = vpop.f32.mrb[0].mxu0
  %v578 = vpop.f32.mrb[0].mxu0
  %v579 = vadd.f32 %v88, %v578
  %v580 = vpop.f32.mrb[0].mxu0
  %581 = vmatprep.mubr.bf16.mxu0 0
  %582 = vmatmul.mubr.bf16.gmra.mrb[0].mxu0 %v332
  %v583 = vpop.f32.mrb[0].mxu0
  %v584 = vadd.f32 %v88, %v583
  %v585 = vpop.f32.mrb[0].mxu0
  %v586 = vpop.f32.mrb[0].mxu0
  %v587 = vadd.f32 %v88, %v586
  %v588 = vpop.f32.mrb[0].mxu0
  %589 = vmatprep.mubr.bf16.mxu0 0
  %590 = vmatmul.mubr.bf16.gmra.mrb[0].mxu0 %v335
  %v591 = vpop.f32.mrb[0].mxu0
  %v592 = vadd.f32 %v88, %v591
  %v593 = vpop.f32.mrb[0].mxu0
  %v594 = vpop.f32.mrb[0].mxu0
  %v595 = vadd.f32 %v88, %v594
  %v596 = vpop.f32.mrb[0].mxu0
  %597 = vmatprep.mubr.bf16.mxu0 0
  %598 = vmatmul.mubr.bf16.gmra.mrb[0].mxu0 %v338
  %v599 = vpop.f32.mrb[0].mxu0
  %v600 = vadd.f32 %v88, %v599
  %v601 = vpop.f32.mrb[0].mxu0
  %v602 = vpop.f32.mrb[0].mxu0
  %v603 = vadd.f32 %v88, %v602
  %v604 = vpop.f32.mrb[0].mxu0
  %605 = vmatprep.mubr.bf16.mxu0 0
  %606 = vmatmul.mubr.bf16.gmra.mrb[0].mxu0 %v341
  %v607 = vpop.f32.mrb[0].mxu0
  %v608 = vadd.f32 %v88, %v607
  %v609 = vpop.f32.mrb[0].mxu0
  %v610 = vpop.f32.mrb[0].mxu0
  %v611 = vadd.f32 %v88, %v610
  %v612 = vpop.f32.mrb[0].mxu0
  %613 = vmatprep.mubr.bf16.mxu0 0
  %614 = vmatmul.mubr.bf16.gmra.mrb[0].mxu0 %v344
  %v615 = vpop.f32.mrb[0].mxu0
  %v616 = vadd.f32 %v88, %v615
  %v617 = vpop.f32.mrb[0].mxu0
  %v618 = vpop.f32.mrb[0].mxu0
  %v619 = vadd.f32 %v88, %v618
  %v620 = vpop.f32.mrb[0].mxu0
  %621 = vmatprep.mubr.bf16.mxu0 0
  %622 = vmatmul.mubr.bf16.gmra.mrb[0].mxu0 %v347
  %v623 = vpop.f32.mrb[0].mxu0
  %v624 = vadd.f32 %v88, %v623
  %v625 = vpop.f32.mrb[0].mxu0
  %v626 = vpop.f32.mrb[0].mxu0
  %v627 = vadd.f32 %v88, %v626
  %v628 = vpop.f32.mrb[0].mxu0
  %629 = vmatprep.mubr.bf16.mxu0 0
  %630 = vmatmul.mubr.bf16.gmra.mrb[0].mxu0 %v350
  %v631 = vpop.f32.mrb[0].mxu0
  %v632 = vadd.f32 %v88, %v631
  %v633 = vpop.f32.mrb[0].mxu0
  %v634 = vpop.f32.mrb[0].mxu0
  %v635 = vadd.f32 %v88, %v634
  %v636 = vpop.f32.mrb[0].mxu0
  %637 = vmatprep.mubr.bf16.mxu0 0
  %638 = vmatmul.mubr.bf16.gmra.mrb[0].mxu0 %v353
  %v639 = vpop.f32.mrb[0].mxu0
  %v640 = vadd.f32 %v88, %v639
  %v641 = vpop.f32.mrb[0].mxu0
  %v642 = vpop.f32.mrb[0].mxu0
  %v643 = vadd.f32 %v88, %v642
  %v644 = vpop.f32.mrb[0].mxu0
  %645 = vmatprep.mubr.bf16.mxu0 0
  %646 = vmatmul.mubr.bf16.gmra.mrb[0].mxu0 %v356
  %v647 = vpop.f32.mrb[0].mxu0
  %v648 = vadd.f32 %v88, %v647
  %v649 = vpop.f32.mrb[0].mxu0
  %v650 = vpop.f32.mrb[0].mxu0
  %v651 = vadd.f32 %v88, %v650
  %v652 = vpop.f32.mrb[0].mxu0
  %653 = vdwg.mxu0
  %v654 = vmax.f32 %v400, 0.0
  %v655 = vmax.f32 %v403, 0.0
  %v656 = vmax.f32 %v408, 0.0
  %v657 = vmax.f32 %v411, 0.0
  %v658 = vmax.f32 %v416, 0.0
  %v659 = vmax.f32 %v419, 0.0
  %v660 = vmax.f32 %v424, 0.0
  %v661 = vmax.f32 %v427, 0.0
  %v662 = vmax.f32 %v432, 0.0
  %v663 = vmax.f32 %v435, 0.0
  %v664 = vmax.f32 %v440, 0.0
  %v665 = vmax.f32 %v443, 0.0
  %v666 = vmax.f32 %v448, 0.0
  %v667 = vmax.f32 %v451, 0.0
  %v668 = vmax.f32 %v456, 0.0
  %v669 = vmax.f32 %v459, 0.0
  %v670 = vmax.f32 %v464, 0.0
  %v671 = vmax.f32 %v467, 0.0
  %v672 = vmax.f32 %v472, 0.0
  %v673 = vmax.f32 %v475, 0.0
  %v674 = vmax.f32 %v480, 0.0
  %v675 = vmax.f32 %v483, 0.0
  %v676 = vmax.f32 %v488, 0.0
  %v677 = vmax.f32 %v491, 0.0
  %v678 = vmax.f32 %v496, 0.0
  %v679 = vmax.f32 %v499, 0.0
  %v680 = vmax.f32 %v504, 0.0
  %v681 = vmax.f32 %v507, 0.0
  %v682 = vmax.f32 %v512, 0.0
  %v683 = vmax.f32 %v515, 0.0
  %v684 = vmax.f32 %v520, 0.0
  %v685 = vmax.f32 %v523, 0.0
  %v686 = vmax.f32 %v528, 0.0
  %v687 = vmax.f32 %v531, 0.0
  %v688 = vmax.f32 %v536, 0.0
  %v689 = vmax.f32 %v539, 0.0
  %v690 = vmax.f32 %v544, 0.0
  %v691 = vmax.f32 %v547, 0.0
  %v692 = vmax.f32 %v552, 0.0
  %v693 = vmax.f32 %v555, 0.0
  %v694 = vmax.f32 %v560, 0.0
  %v695 = vmax.f32 %v563, 0.0
  %v696 = vmax.f32 %v568, 0.0
  %v697 = vmax.f32 %v571, 0.0
  %v698 = vmax.f32 %v576, 0.0
  %v699 = vmax.f32 %v579, 0.0
  %v700 = vmax.f32 %v584, 0.0
  %v701 = vmax.f32 %v587, 0.0
  %v702 = vmax.f32 %v592, 0.0
  %v703 = vmax.f32 %v595, 0.0
  %v704 = vmax.f32 %v600, 0.0
  %v705 = vmax.f32 %v603, 0.0
  %v706 = vmax.f32 %v608, 0.0
  %v707 = vmax.f32 %v611, 0.0
  %v708 = vmax.f32 %v616, 0.0
  %v709 = vmax.f32 %v619, 0.0
  %v710 = vmax.f32 %v624, 0.0
  %v711 = vmax.f32 %v627, 0.0
  %v712 = vmax.f32 %v632, 0.0
  %v713 = vmax.f32 %v635, 0.0
  %v714 = vmax.f32 %v640, 0.0
  %v715 = vmax.f32 %v643, 0.0
  %v716 = vmax.f32 %v648, 0.0
  %v717 = vmax.f32 %v651, 0.0
  %v718 = vmin.f32 %v654, 6.0
  %v719 = vmin.f32 %v655, 6.0
  %v720 = vmin.f32 %v656, 6.0
  %v721 = vmin.f32 %v657, 6.0
  %v722 = vmin.f32 %v658, 6.0
  %v723 = vmin.f32 %v659, 6.0
  %v724 = vmin.f32 %v660, 6.0
  %v725 = vmin.f32 %v661, 6.0
  %v726 = vmin.f32 %v662, 6.0
  %v727 = vmin.f32 %v663, 6.0
  %v728 = vmin.f32 %v664, 6.0
  %v729 = vmin.f32 %v665, 6.0
  %v730 = vmin.f32 %v666, 6.0
  %v731 = vmin.f32 %v667, 6.0
  %v732 = vmin.f32 %v668, 6.0
  %v733 = vmin.f32 %v669, 6.0
  %v734 = vmin.f32 %v670, 6.0
  %v735 = vmin.f32 %v671, 6.0
  %v736 = vmin.f32 %v672, 6.0
  %v737 = vmin.f32 %v673, 6.0
  %v738 = vmin.f32 %v674, 6.0
  %v739 = vmin.f32 %v675, 6.0
  %v740 = vmin.f32 %v676, 6.0
  %v741 = vmin.f32 %v677, 6.0
  %v742 = vmin.f32 %v678, 6.0
  %v743 = vmin.f32 %v679, 6.0
  %v744 = vmin.f32 %v680, 6.0
  %v745 = vmin.f32 %v681, 6.0
  %v746 = vmin.f32 %v682, 6.0
  %v747 = vmin.f32 %v683, 6.0
  %v748 = vmin.f32 %v684, 6.0
  %v749 = vmin.f32 %v685, 6.0
  %v750 = vmin.f32 %v686, 6.0
  %v751 = vmin.f32 %v687, 6.0
  %v752 = vmin.f32 %v688, 6.0
  %v753 = vmin.f32 %v689, 6.0
  %v754 = vmin.f32 %v690, 6.0
  %v755 = vmin.f32 %v691, 6.0
  %v756 = vmin.f32 %v692, 6.0
  %v757 = vmin.f32 %v693, 6.0
  %v758 = vmin.f32 %v694, 6.0
  %v759 = vmin.f32 %v695, 6.0
  %v760 = vmin.f32 %v696, 6.0
  %v761 = vmin.f32 %v697, 6.0
  %v762 = vmin.f32 %v698, 6.0
  %v763 = vmin.f32 %v699, 6.0
  %v764 = vmin.f32 %v700, 6.0
  %v765 = vmin.f32 %v701, 6.0
  %v766 = vmin.f32 %v702, 6.0
  %v767 = vmin.f32 %v703, 6.0
  %v768 = vmin.f32 %v704, 6.0
  %v769 = vmin.f32 %v705, 6.0
  %v770 = vmin.f32 %v706, 6.0
  %v771 = vmin.f32 %v707, 6.0
  %v772 = vmin.f32 %v708, 6.0
  %v773 = vmin.f32 %v709, 6.0
  %v774 = vmin.f32 %v710, 6.0
  %v775 = vmin.f32 %v711, 6.0
  %v776 = vmin.f32 %v712, 6.0
  %v777 = vmin.f32 %v713, 6.0
  %v778 = vmin.f32 %v714, 6.0
  %v779 = vmin.f32 %v715, 6.0
  %v780 = vmin.f32 %v716, 6.0
  %v781 = vmin.f32 %v717, 6.0
  %v782 = vpack.c.bf16 %v719, %v718
  %v783 = vpack.c.bf16 %v721, %v720
  %v784 = vpack.c.bf16 %v723, %v722
  %v785 = vpack.c.bf16 %v725, %v724
  %v786 = vpack.c.bf16 %v727, %v726
  %v787 = vpack.c.bf16 %v729, %v728
  %v788 = vpack.c.bf16 %v731, %v730
  %v789 = vpack.c.bf16 %v733, %v732
  %v790 = vpack.c.bf16 %v735, %v734
  %v791 = vpack.c.bf16 %v737, %v736
  %v792 = vpack.c.bf16 %v739, %v738
  %v793 = vpack.c.bf16 %v741, %v740
  %v794 = vpack.c.bf16 %v743, %v742
  %v795 = vpack.c.bf16 %v745, %v744
  %v796 = vpack.c.bf16 %v747, %v746
  %v797 = vpack.c.bf16 %v749, %v748
  %v798 = vpack.c.bf16 %v751, %v750
  %v799 = vpack.c.bf16 %v753, %v752
  %v800 = vpack.c.bf16 %v755, %v754
  %v801 = vpack.c.bf16 %v757, %v756
  %v802 = vpack.c.bf16 %v759, %v758
  %v803 = vpack.c.bf16 %v761, %v760
  %v804 = vpack.c.bf16 %v763, %v762
  %v805 = vpack.c.bf16 %v765, %v764
  %v806 = vpack.c.bf16 %v767, %v766
  %v807 = vpack.c.bf16 %v769, %v768
  %v808 = vpack.c.bf16 %v771, %v770
  %v809 = vpack.c.bf16 %v773, %v772
  %v810 = vpack.c.bf16 %v775, %v774
  %v811 = vpack.c.bf16 %v777, %v776
  %v812 = vpack.c.bf16 %v779, %v778
  %v813 = vpack.c.bf16 %v781, %v780
  %v846 = vunpack.c.l.b16 %v782
  %v847 = vunpack.c.h.b16 %v782
  %v848 = vunpack.c.l.b16 %v783
  %v849 = vunpack.c.h.b16 %v783
  %v850 = vunpack.c.l.b16 %v784
  %v851 = vunpack.c.h.b16 %v784
  %v852 = vunpack.c.l.b16 %v785
  %v853 = vunpack.c.h.b16 %v785
  %v854 = vunpack.c.l.b16 %v786
  %v855 = vunpack.c.h.b16 %v786
  %v856 = vunpack.c.l.b16 %v787
  %v857 = vunpack.c.h.b16 %v787
  %v858 = vunpack.c.l.b16 %v788
  %v859 = vunpack.c.h.b16 %v788
  %v860 = vunpack.c.l.b16 %v789
  %v861 = vunpack.c.h.b16 %v789
  %v862 = vunpack.c.l.b16 %v790
  %v863 = vunpack.c.h.b16 %v790
  %v864 = vunpack.c.l.b16 %v791
  %v865 = vunpack.c.h.b16 %v791
  %v866 = vunpack.c.l.b16 %v792
  %v867 = vunpack.c.h.b16 %v792
  %v868 = vunpack.c.l.b16 %v793
  %v869 = vunpack.c.h.b16 %v793
  %v870 = vunpack.c.l.b16 %v794
  %v871 = vunpack.c.h.b16 %v794
  %v872 = vunpack.c.l.b16 %v795
  %v873 = vunpack.c.h.b16 %v795
  %v874 = vunpack.c.l.b16 %v796
  %v875 = vunpack.c.h.b16 %v796
  %v876 = vunpack.c.l.b16 %v797
  %v877 = vunpack.c.h.b16 %v797
  %v878 = vunpack.c.l.b16 %v798
  %v879 = vunpack.c.h.b16 %v798
  %v880 = vunpack.c.l.b16 %v799
  %v881 = vunpack.c.h.b16 %v799
  %v882 = vunpack.c.l.b16 %v800
  %v883 = vunpack.c.h.b16 %v800
  %v884 = vunpack.c.l.b16 %v801
  %v885 = vunpack.c.h.b16 %v801
  %v886 = vunpack.c.l.b16 %v802
  %v887 = vunpack.c.h.b16 %v802
  %v888 = vunpack.c.l.b16 %v803
  %v889 = vunpack.c.h.b16 %v803
  %v890 = vunpack.c.l.b16 %v804
  %v891 = vunpack.c.h.b16 %v804
  %v892 = vunpack.c.l.b16 %v805
  %v893 = vunpack.c.h.b16 %v805
  %v894 = vunpack.c.l.b16 %v806
  %v895 = vunpack.c.h.b16 %v806
  %v896 = vunpack.c.l.b16 %v807
  %v897 = vunpack.c.h.b16 %v807
  %v898 = vunpack.c.l.b16 %v808
  %v899 = vunpack.c.h.b16 %v808
  %v900 = vunpack.c.l.b16 %v809
  %v901 = vunpack.c.h.b16 %v809
  %v902 = vunpack.c.l.b16 %v810
  %v903 = vunpack.c.h.b16 %v810
  %v904 = vunpack.c.l.b16 %v811
  %v905 = vunpack.c.h.b16 %v811
  %v906 = vunpack.c.l.b16 %v812
  %v907 = vunpack.c.h.b16 %v812
  %v908 = vunpack.c.l.b16 %v813
  %v909 = vunpack.c.h.b16 %v813
  %v910 = vpack.c.b16 %v846, %v846
  %v911 = vpack.c.b16 %v847, %v847
  %v912 = vpack.c.b16 %v848, %v848
  %v913 = vpack.c.b16 %v849, %v849
  %v914 = vpack.c.b16 %v850, %v850
  %v915 = vpack.c.b16 %v851, %v851
  %v916 = vpack.c.b16 %v852, %v852
  %v917 = vpack.c.b16 %v853, %v853
  %v918 = vpack.c.b16 %v854, %v854
  %v919 = vpack.c.b16 %v855, %v855
  %v920 = vpack.c.b16 %v856, %v856
  %v921 = vpack.c.b16 %v857, %v857
  %v922 = vpack.c.b16 %v858, %v858
  %v923 = vpack.c.b16 %v859, %v859
  %v924 = vpack.c.b16 %v860, %v860
  %v925 = vpack.c.b16 %v861, %v861
  %v926 = vpack.c.b16 %v862, %v862
  %v927 = vpack.c.b16 %v863, %v863
  %v928 = vpack.c.b16 %v864, %v864
  %v929 = vpack.c.b16 %v865, %v865
  %v930 = vpack.c.b16 %v866, %v866
  %v931 = vpack.c.b16 %v867, %v867
  %v932 = vpack.c.b16 %v868, %v868
  %v933 = vpack.c.b16 %v869, %v869
  %v934 = vpack.c.b16 %v870, %v870
  %v935 = vpack.c.b16 %v871, %v871
  %v936 = vpack.c.b16 %v872, %v872
  %v937 = vpack.c.b16 %v873, %v873
  %v938 = vpack.c.b16 %v874, %v874
  %v939 = vpack.c.b16 %v875, %v875
  %v940 = vpack.c.b16 %v876, %v876
  %v941 = vpack.c.b16 %v877, %v877
  %v942 = vpack.c.b16 %v878, %v878
  %v943 = vpack.c.b16 %v879, %v879
  %v944 = vpack.c.b16 %v880, %v880
  %v945 = vpack.c.b16 %v881, %v881
  %v946 = vpack.c.b16 %v882, %v882
  %v947 = vpack.c.b16 %v883, %v883
  %v948 = vpack.c.b16 %v884, %v884
  %v949 = vpack.c.b16 %v885, %v885
  %v950 = vpack.c.b16 %v886, %v886
  %v951 = vpack.c.b16 %v887, %v887
  %v952 = vpack.c.b16 %v888, %v888
  %v953 = vpack.c.b16 %v889, %v889
  %v954 = vpack.c.b16 %v890, %v890
  %v955 = vpack.c.b16 %v891, %v891
  %v956 = vpack.c.b16 %v892, %v892
  %v957 = vpack.c.b16 %v893, %v893
  %v958 = vpack.c.b16 %v894, %v894
  %v959 = vpack.c.b16 %v895, %v895
  %v960 = vpack.c.b16 %v896, %v896
  %v961 = vpack.c.b16 %v897, %v897
  %v962 = vpack.c.b16 %v898, %v898
  %v963 = vpack.c.b16 %v899, %v899
  %v964 = vpack.c.b16 %v900, %v900
  %v965 = vpack.c.b16 %v901, %v901
  %v966 = vpack.c.b16 %v902, %v902
  %v967 = vpack.c.b16 %v903, %v903
  %v968 = vpack.c.b16 %v904, %v904
  %v969 = vpack.c.b16 %v905, %v905
  %v970 = vpack.c.b16 %v906, %v906
  %v971 = vpack.c.b16 %v907, %v907
  %v972 = vpack.c.b16 %v908, %v908
  %v973 = vpack.c.b16 %v909, %v909
  %vm1038 = vcmask 257024
  %1039 = vst.msk [vmem:[%s3] sm:$0xf] %vm1038, %v910
  %1040 = vst.msk [vmem:[%s3 + $0x4] sm:$0xf] %vm1038, %v911
  %1041 = vst.msk [vmem:[%s3 + $0x8] sm:$0xf] %vm1038, %v912
  %1042 = vst.msk [vmem:[%s3 + $0xc] sm:$0xf] %vm1038, %v913
  %1043 = vst.msk [vmem:[%s3 + $0x10] sm:$0xf] %vm1038, %v914
  %1044 = vst.msk [vmem:[%s3 + $0x14] sm:$0xf] %vm1038, %v915
  %1045 = vst.msk [vmem:[%s3 + $0x18] sm:$0xf] %vm1038, %v916
  %1046 = vst.msk [vmem:[%s3 + $0x1c] sm:$0xf] %vm1038, %v917
  %1047 = vst.msk [vmem:[%s3 + $0x20] sm:$0xf] %vm1038, %v918
  %1048 = vst.msk [vmem:[%s3 + $0x24] sm:$0xf] %vm1038, %v919
  %1049 = vst.msk [vmem:[%s3 + $0x28] sm:$0xf] %vm1038, %v920
  %1050 = vst.msk [vmem:[%s3 + $0x2c] sm:$0xf] %vm1038, %v921
  %1051 = vst.msk [vmem:[%s3 + $0x30] sm:$0xf] %vm1038, %v922
  %1052 = vst.msk [vmem:[%s3 + $0x34] sm:$0xf] %vm1038, %v923
  %1053 = vst.msk [vmem:[%s3 + $0x38] sm:$0xf] %vm1038, %v924
  %1054 = vst.msk [vmem:[%s3 + $0x3c] sm:$0xf] %vm1038, %v925
  %1055 = vst.msk [vmem:[%s3 + $0x40] sm:$0xf] %vm1038, %v926
  %1056 = vst.msk [vmem:[%s3 + $0x44] sm:$0xf] %vm1038, %v927
  %1057 = vst.msk [vmem:[%s3 + $0x48] sm:$0xf] %vm1038, %v928
  %1058 = vst.msk [vmem:[%s3 + $0x4c] sm:$0xf] %vm1038, %v929
  %1059 = vst.msk [vmem:[%s3 + $0x50] sm:$0xf] %vm1038, %v930
  %1060 = vst.msk [vmem:[%s3 + $0x54] sm:$0xf] %vm1038, %v931
  %1061 = vst.msk [vmem:[%s3 + $0x58] sm:$0xf] %vm1038, %v932
  %1062 = vst.msk [vmem:[%s3 + $0x5c] sm:$0xf] %vm1038, %v933
  %1063 = vst.msk [vmem:[%s3 + $0x60] sm:$0xf] %vm1038, %v934
  %1064 = vst.msk [vmem:[%s3 + $0x64] sm:$0xf] %vm1038, %v935
  %1065 = vst.msk [vmem:[%s3 + $0x68] sm:$0xf] %vm1038, %v936
  %1066 = vst.msk [vmem:[%s3 + $0x6c] sm:$0xf] %vm1038, %v937
  %1067 = vst.msk [vmem:[%s3 + $0x70] sm:$0xf] %vm1038, %v938
  %1068 = vst.msk [vmem:[%s3 + $0x74] sm:$0xf] %vm1038, %v939
  %1069 = vst.msk [vmem:[%s3 + $0x78] sm:$0xf] %vm1038, %v940
  %1070 = vst.msk [vmem:[%s3 + $0x7c] sm:$0xf] %vm1038, %v941
  %1071 = vst.msk [vmem:[%s3 + $0x80] sm:$0xf] %vm1038, %v942
  %1072 = vst.msk [vmem:[%s3 + $0x84] sm:$0xf] %vm1038, %v943
  %1073 = vst.msk [vmem:[%s3 + $0x88] sm:$0xf] %vm1038, %v944
  %1074 = vst.msk [vmem:[%s3 + $0x8c] sm:$0xf] %vm1038, %v945
  %1075 = vst.msk [vmem:[%s3 + $0x90] sm:$0xf] %vm1038, %v946
  %1076 = vst.msk [vmem:[%s3 + $0x94] sm:$0xf] %vm1038, %v947
  %1077 = vst.msk [vmem:[%s3 + $0x98] sm:$0xf] %vm1038, %v948
  %1078 = vst.msk [vmem:[%s3 + $0x9c] sm:$0xf] %vm1038, %v949
  %1079 = vst.msk [vmem:[%s3 + $0xa0] sm:$0xf] %vm1038, %v950
  %1080 = vst.msk [vmem:[%s3 + $0xa4] sm:$0xf] %vm1038, %v951
  %1081 = vst.msk [vmem:[%s3 + $0xa8] sm:$0xf] %vm1038, %v952
  %1082 = vst.msk [vmem:[%s3 + $0xac] sm:$0xf] %vm1038, %v953
  %1083 = vst.msk [vmem:[%s3 + $0xb0] sm:$0xf] %vm1038, %v954
  %1084 = vst.msk [vmem:[%s3 + $0xb4] sm:$0xf] %vm1038, %v955
  %1085 = vst.msk [vmem:[%s3 + $0xb8] sm:$0xf] %vm1038, %v956
  %1086 = vst.msk [vmem:[%s3 + $0xbc] sm:$0xf] %vm1038, %v957
  %1087 = vst.msk [vmem:[%s3 + $0xc0] sm:$0xf] %vm1038, %v958
  %1088 = vst.msk [vmem:[%s3 + $0xc4] sm:$0xf] %vm1038, %v959
  %1089 = vst.msk [vmem:[%s3 + $0xc8] sm:$0xf] %vm1038, %v960
  %1090 = vst.msk [vmem:[%s3 + $0xcc] sm:$0xf] %vm1038, %v961
  %1091 = vst.msk [vmem:[%s3 + $0xd0] sm:$0xf] %vm1038, %v962
  %1092 = vst.msk [vmem:[%s3 + $0xd4] sm:$0xf] %vm1038, %v963
  %1093 = vst.msk [vmem:[%s3 + $0xd8] sm:$0xf] %vm1038, %v964
  %1094 = vst.msk [vmem:[%s3 + $0xdc] sm:$0xf] %vm1038, %v965
  %1095 = vst.msk [vmem:[%s3 + $0xe0] sm:$0xf] %vm1038, %v966
  %1096 = vst.msk [vmem:[%s3 + $0xe4] sm:$0xf] %vm1038, %v967
  %1097 = vst.msk [vmem:[%s3 + $0xe8] sm:$0xf] %vm1038, %v968
  %1098 = vst.msk [vmem:[%s3 + $0xec] sm:$0xf] %vm1038, %v969
  %1099 = vst.msk [vmem:[%s3 + $0xf0] sm:$0xf] %vm1038, %v970
  %1100 = vst.msk [vmem:[%s3 + $0xf4] sm:$0xf] %vm1038, %v971
  %1101 = vst.msk [vmem:[%s3 + $0xf8] sm:$0xf] %vm1038, %v972
  %1102 = vst.msk [vmem:[%s3 + $0xfc] sm:$0xf] %vm1038, %v973
  // Predicated region
  $region14: #{tpu_custom_call.1} parent=0 // pred_check
    _
  $region15: #{tpu_custom_call.1} parent=0 // pred_check_branch
    %1104 = sbr.rel (0) target = $region17
  $region16: #{tpu_custom_call.1} parent=0 // pred_region
    _
  $region17: #{tpu_custom_call.1} parent=0 // pred_fallthru
    _
  // Predicated region
  $region18: #{tpu_custom_call.1} parent=0 // pred_check
    _
  $region19: #{tpu_custom_call.1} parent=0 // pred_check_branch
    %1106 = sbr.rel (0) target = $region21
  $region20: #{tpu_custom_call.1} parent=0 // pred_region
    _
  $region21: #{tpu_custom_call.1} parent=0 // pred_fallthru
    _

</llo_original>
